<compile_context>
chip_gen: v7x
topology: tpu7x:2x2x1
jax: 0.10.0
libtpu: 0.0.40
codegen_flags: <defaults>
</compile_context>

<pallas_src>
import functools
import math

import jax
import jax.numpy as jnp
from jax.experimental import pallas as pl
from jax.experimental.pallas import tpu as pltpu

_LANE = 128     # last dim of any VMEM block pads to 128 lanes
_SUBLANE = 8    # second-to-last dim pads to 8 sublanes (f32)


def _rup(v, m):
    return ((v + m - 1) // m) * m


# -----------------------------------------------------------------------------
# Kernel: one batch tile, all three layers fused (no HBM round-trips for h).
# -----------------------------------------------------------------------------
def fcnn_kernel(x_ref, w1_ref, b1_ref, w2_ref, b2_ref, w3_ref, b3_ref, o_ref):
    # Cast x AFTER the HBM->VMEM load (wrapper never re-streams x to change dtype).
    x = x_ref[...].astype(w1_ref.dtype)
    # Layer 1: Linear + ReLU (f32 accumulation on the MXU)
    h = jnp.dot(x, w1_ref[...], preferred_element_type=jnp.float32)
    h = jnp.maximum(h + b1_ref[...], 0.0)
    # Layer 2: Linear + ReLU
    h = jnp.dot(h.astype(w2_ref.dtype), w2_ref[...], preferred_element_type=jnp.float32)
    h = jnp.maximum(h + b2_ref[...], 0.0)
    # Output layer: Linear (no activation)
    out = jnp.dot(h.astype(w3_ref.dtype), w3_ref[...], preferred_element_type=jnp.float32)
    o_ref[...] = (out + b3_ref[...]).astype(o_ref.dtype)


# -----------------------------------------------------------------------------
# Generation-aware VMEM budget & TensorCore count (safe fallbacks everywhere).
# -----------------------------------------------------------------------------
@functools.lru_cache(maxsize=1)
def _chip_budget():
    """Returns (vmem_limit_bytes, num_tensorcores).

    v5e/v6e: 128 MiB physical VMEM/TC -> 64 MiB scoped limit.
    v7x    :  64 MiB physical VMEM/TC -> 48 MiB scoped limit; 2 TCs/chip, so
              mid/large batches should run a >=2-step parallel grid.
    """
    vmem_cap = None
    n_tc = 1
    try:
        info = pltpu.get_tpu_info()
        cap = int(getattr(info, "vmem_capacity_bytes", 0) or 0)
        vmem_cap = cap if cap > 0 else None
        for attr in ("num_cores", "core_count", "tensorcore_count", "num_tensorcores"):
            v = getattr(info, attr, None)
            if v:
                n_tc = max(n_tc, int(v))
                break
    except Exception:
        pass
    try:
        kind = str(getattr(jax.devices()[0], "device_kind", "")).lower()
        if "v7" in kind:
            n_tc = max(n_tc, 2)
    except Exception:
        pass
    if vmem_cap is None:
        vmem_cap = 64 * 1024 * 1024            # conservative (v7x-sized) fallback
    vmem_limit = min((vmem_cap * 3) // 4, 64 * 1024 * 1024)
    return vmem_limit, n_tc


# -----------------------------------------------------------------------------
# VMEM accounting with lane/sublane-PADDED block sizes (not nominal sizes).
# -----------------------------------------------------------------------------
def _const_vmem_bytes(dims, w_itemsize):
    """Padded VMEM bytes of the resident weight/bias blocks."""
    d_in, h1, h2, d_out = dims
    total = 0
    for r, c in ((d_in, h1), (1, h1), (h1, h2), (1, h2), (h2, d_out), (1, d_out)):
        total += _rup(r, _SUBLANE) * _rup(c, _LANE) * w_itemsize
    return total


def _row_vmem_bytes(dims, x_itemsize, out_itemsize, double_buffered):
    """Padded VMEM bytes per batch row: x/out blocks + in-kernel f32 h1/h2."""
    d_in, h1, h2, d_out = dims
    nbuf = 2 if double_buffered else 1
    return (nbuf * _rup(d_in, _LANE) * x_itemsize
            + nbuf * _rup(d_out, _LANE) * out_itemsize
            + _rup(h1, _LANE) * 4 + _rup(h2, _LANE) * 4)


_TILE_CANDIDATES = (8192, 4096, 2048, 1024, 512, 256)       # largest first


def simple_fcnn(x, params, *, batch_tile=None, compute_dtype=None):
    """Fused 3-layer MLP forward.

    x: (B, D_in).  params: [(w1,b1),(w2,b2),(w3,b3)], w_i (in,out), b_i (1,out).
    batch_tile: force the tiled path with this row tile.
    compute_dtype: optionally cast ONLY the weights (e.g. bf16); x is cast
        in-kernel after load, accumulation stays f32, biases stay f32.
    """
    (w1, b1), (w2, b2), (w3, b3) = params
    B, d_in = x.shape
    h1, h2, d_out = w1.shape[1], w2.shape[1], w3.shape[1]
    dims = (d_in, h1, h2, d_out)
    out_dtype = x.dtype

    if compute_dtype is not None:
        # Tiny, reused-forever weights only; casting x here would re-stream all
        # of x through HBM in a separate XLA op (kernel is HBM/overhead bound).
        w1, w2, w3 = (w.astype(compute_dtype) for w in (w1, w2, w3))
    weights = (w1, b1, w2, b2, w3, b3)

    vmem_limit, n_tc = _chip_budget()
    x_isz = jnp.dtype(x.dtype).itemsize
    o_isz = jnp.dtype(out_dtype).itemsize
    w_isz = jnp.dtype(w1.dtype).itemsize
    budget = int(0.8 * vmem_limit) - _const_vmem_bytes(dims, w_isz)

    # ---- Grid-free fast path: zero pipeline steps, whole problem resident ----
    if batch_tile is None:
        row1 = _row_vmem_bytes(dims, x_isz, o_isz, double_buffered=False)
        single_max = min(8192, max(0, budget) // row1)
        if n_tc > 1:
            single_max = min(single_max, 1024)  # v7x: let both cores work past this
        if B <= single_max:
            vspec = pl.BlockSpec(memory_space=pltpu.MemorySpace.VMEM)
            return pl.pallas_call(
                fcnn_kernel,
                out_shape=jax.ShapeDtypeStruct((B, d_out), out_dtype),
                in_specs=[vspec] * 7,
                out_specs=vspec,
                compiler_params=pltpu.CompilerParams(vmem_limit_bytes=vmem_limit),
            )(x, *weights)

    # ---- Tiled path: tile only the batch dimension ---------------------------
    if batch_tile is None:
        row2 = _row_vmem_bytes(dims, x_isz, o_isz, double_buffered=True)
        fitting = [c for c in _TILE_CANDIDATES if c * row2 <= budget]
        batch_tile = fitting[0] if fitting else 256
        # Balance rows over grid steps (>= n_tc of them) so padding waste stays
        # below one 256-row chunk per step and every TensorCore gets work.
        n_steps = max(pl.cdiv(B, batch_tile), n_tc)
        batch_tile = max(256, _rup(pl.cdiv(B, n_steps), 256))
    batch_tile = max(_SUBLANE, _rup(int(batch_tile), _SUBLANE))

    b_pad = _rup(B, batch_tile)
    x_p = jnp.pad(x, ((0, b_pad - B), (0, 0))) if b_pad != B else x
    grid = (b_pad // batch_tile,)

    def _call(single_buffer_consts):
        def const_spec(shape):
            # Constant-index blocks (index_map always (0,0)): single-buffer
            # them -- re-buffering a never-changing block is pure VMEM waste.
            if single_buffer_consts:
                return pl.BlockSpec(shape, lambda i: (0, 0),
                                    pipeline_mode=pl.Buffered(1))
            return pl.BlockSpec(shape, lambda i: (0, 0))

        in_specs = [
            pl.BlockSpec((batch_tile, d_in), lambda i: (i, 0)),  # x tile (double-buffered)
            const_spec((d_in, h1)), const_spec((1, h1)),
            const_spec((h1, h2)), const_spec((1, h2)),
            const_spec((h2, d_out)), const_spec((1, d_out)),
        ]
        # D_out=8 is lane-sparse (masked stores), but writeback bytes are
        # negligible at this size -- not worth re-laying-out the output.
        out_specs = pl.BlockSpec((batch_tile, d_out), lambda i: (i, 0))
        return pl.pallas_call(
            fcnn_kernel,
            out_shape=jax.ShapeDtypeStruct((b_pad, d_out), out_dtype),
            grid=grid,
            in_specs=in_specs,
            out_specs=out_specs,
            compiler_params=pltpu.CompilerParams(
                dimension_semantics=("parallel",),
                vmem_limit_bytes=vmem_limit,
            ),
        )(x_p, *weights)

    try:
        out = _call(single_buffer_consts=True)
    except Exception:
        # pipeline_mode / Buffered support can vary across JAX versions; default
        # double-buffering of ~60 KiB of constant blocks is a safe fallback.
        out = _call(single_buffer_consts=False)
    return out[:B] if b_pad != B else out


# -----------------------------------------------------------------------------
# Init / reference
# -----------------------------------------------------------------------------
def init_linear(key, fan_in, fan_out):
    """Matches nn.Linear's default init U(-1/sqrt(fan_in), 1/sqrt(fan_in))."""
    kw, kb = jax.random.split(key)
    bound = 1.0 / math.sqrt(fan_in)
    w = jax.random.uniform(kw, (fan_in, fan_out), jnp.float32, -bound, bound)  # torch weight.T
    b = jax.random.uniform(kb, (1, fan_out), jnp.float32, -bound, bound)
    return w, b


def reference_fcnn(x, params):
    (w1, b1), (w2, b2), (w3, b3) = params
    h = jnp.maximum(x @ w1 + b1, 0.0)
    h = jnp.maximum(h @ w2 + b2, 0.0)
    return h @ w3 + b3


if __name__ == "__main__":
    # SimpleFCNN(input_size=16, hidden_sizes=[32, 64], output_size=8)
    input_size, hidden_sizes, output_size = 16, [32, 64], 8

    key = jax.random.PRNGKey(0)
    kx, kx2, k1, k2, k3 = jax.random.split(key, 5)
    params = [
        init_linear(k1, input_size, hidden_sizes[0]),
        init_linear(k2, hidden_sizes[0], hidden_sizes[1]),
        init_linear(k3, hidden_sizes[1], output_size),
    ]

    # 1) Small batch -> grid-free fast path (everything VMEM-resident).
    x_small = jax.random.normal(kx, (16, input_size), jnp.float32)
    out_small = jax.block_until_ready(simple_fcnn(x_small, params))
    ref_small = reference_fcnn(x_small, params)
    assert out_small.shape == (16, output_size)
    assert jnp.allclose(out_small, ref_small, atol=1e-5, rtol=1e-5), "fast path mismatch"

    # 2) Awkward batch, forced tiled path -> pad-to-tile + slice, parallel grid.
    x_big = jax.random.normal(kx2, (300, input_size), jnp.float32)
    out_big = jax.block_until_ready(simple_fcnn(x_big, params, batch_tile=256))
    ref_big = reference_fcnn(x_big, params)
    assert out_big.shape == (300, output_size)
    assert jnp.allclose(out_big, ref_big, atol=1e-5, rtol=1e-5), "tiled path mismatch"

    # 3) Optional bf16-weight compute path (f32 accumulation, looser tolerance).
    out_bf16 = jax.block_until_ready(
        simple_fcnn(x_small, params, compute_dtype=jnp.bfloat16))
    assert jnp.allclose(out_bf16, ref_small, atol=5e-2, rtol=5e-2), "bf16 path mismatch"

    print("KERNEL_OK")
</pallas_src>

<mosaic_0001>
module attributes {stable_mosaic.version = 11 : i64} {
  func.func @fcnn_kernel(%arg0: memref<16x16xf32, #tpu.memory_space<vmem>>, %arg1: memref<16x32xf32, #tpu.memory_space<vmem>>, %arg2: memref<1x32xf32, #tpu.memory_space<vmem>>, %arg3: memref<32x64xf32, #tpu.memory_space<vmem>>, %arg4: memref<1x64xf32, #tpu.memory_space<vmem>>, %arg5: memref<64x8xf32, #tpu.memory_space<vmem>>, %arg6: memref<1x8xf32, #tpu.memory_space<vmem>>, %arg7: memref<16x8xf32, #tpu.memory_space<vmem>>) attributes {dimension_semantics = [], scalar_prefetch = 0 : i64, scratch_operands = 0 : i64, tpu.core_type = #tpu.core_type<tc>} {
    %c0 = arith.constant 0 : index
    %c0_0 = arith.constant 0 : index
    %0 = vector.load %arg0[%c0, %c0_0] : memref<16x16xf32, #tpu.memory_space<vmem>>, vector<16x16xf32>
    %c0_1 = arith.constant 0 : index
    %c0_2 = arith.constant 0 : index
    %1 = vector.load %arg1[%c0_1, %c0_2] : memref<16x32xf32, #tpu.memory_space<vmem>>, vector<16x32xf32>
    %cst = arith.constant dense<0.000000e+00> : vector<16x32xf32>
    %2 = tpu.matmul %0, %1, %cst {dimension_numbers = #tpu.dot_dimension_numbers<[1], [0], [0], [1], [0, 0, 1, 1], [], []>} : vector<16x16xf32>, vector<16x32xf32>, vector<16x32xf32> -> vector<16x32xf32>
    %c0_3 = arith.constant 0 : index
    %c0_4 = arith.constant 0 : index
    %3 = vector.load %arg2[%c0_3, %c0_4] : memref<1x32xf32, #tpu.memory_space<vmem>>, vector<1x32xf32>
    %4 = vector.broadcast %3 : vector<1x32xf32> to vector<16x32xf32>
    %5 = arith.addf %2, %4 : vector<16x32xf32>
    %cst_5 = arith.constant 0.000000e+00 : f32
    %6 = vector.broadcast %cst_5 : f32 to vector<16x32xf32>
    %7 = arith.maximumf %5, %6 : vector<16x32xf32>
    %c0_6 = arith.constant 0 : index
    %c0_7 = arith.constant 0 : index
    %8 = vector.load %arg3[%c0_6, %c0_7] : memref<32x64xf32, #tpu.memory_space<vmem>>, vector<32x64xf32>
    %cst_8 = arith.constant dense<0.000000e+00> : vector<16x64xf32>
    %9 = tpu.matmul %7, %8, %cst_8 {dimension_numbers = #tpu.dot_dimension_numbers<[1], [0], [0], [1], [0, 0, 1, 1], [], []>} : vector<16x32xf32>, vector<32x64xf32>, vector<16x64xf32> -> vector<16x64xf32>
    %c0_9 = arith.constant 0 : index
    %c0_10 = arith.constant 0 : index
    %10 = vector.load %arg4[%c0_9, %c0_10] : memref<1x64xf32, #tpu.memory_space<vmem>>, vector<1x64xf32>
    %11 = vector.broadcast %10 : vector<1x64xf32> to vector<16x64xf32>
    %12 = arith.addf %9, %11 : vector<16x64xf32>
    %cst_11 = arith.constant 0.000000e+00 : f32
    %13 = vector.broadcast %cst_11 : f32 to vector<16x64xf32>
    %14 = arith.maximumf %12, %13 : vector<16x64xf32>
    %c0_12 = arith.constant 0 : index
    %c0_13 = arith.constant 0 : index
    %15 = vector.load %arg5[%c0_12, %c0_13] : memref<64x8xf32, #tpu.memory_space<vmem>>, vector<64x8xf32>
    %cst_14 = arith.constant dense<0.000000e+00> : vector<16x8xf32>
    %16 = tpu.matmul %14, %15, %cst_14 {dimension_numbers = #tpu.dot_dimension_numbers<[1], [0], [0], [1], [0, 0, 1, 1], [], []>} : vector<16x64xf32>, vector<64x8xf32>, vector<16x8xf32> -> vector<16x8xf32>
    %c0_15 = arith.constant 0 : index
    %c0_16 = arith.constant 0 : index
    %17 = vector.load %arg6[%c0_15, %c0_16] : memref<1x8xf32, #tpu.memory_space<vmem>>, vector<1x8xf32>
    %18 = vector.broadcast %17 : vector<1x8xf32> to vector<16x8xf32>
    %19 = arith.addf %16, %18 : vector<16x8xf32>
    %c0_17 = arith.constant 0 : index
    %c0_18 = arith.constant 0 : index
    %20 = vector.load %arg7[%c0_17, %c0_18] : memref<16x8xf32, #tpu.memory_space<vmem>>, vector<16x8xf32>
    tpu.vector_store %arg7[%c0_17, %c0_18], %19 {strides = array<i32>} : memref<16x8xf32, #tpu.memory_space<vmem>>, vector<16x8xf32>,
    return
  }
}

</mosaic_0001>

<llo_original>
// kernel: tpu_custom_call.1
$region0: #{tpu_custom_call.1}
  #allocation0 [shape = 'u32[]', space=smem, size = 0x4, offset = 0x4, fixed_abs, tag = 'smem constant byte address 0x4 - core index']
  #allocation1 [shape = 'u32[144,128]{1,0:T(1,128)}', space=vmem, size = 0x12000, scoped, tag = 'internal scratch']
  %s0 = inlined_call_operand.vmem [shape: f32[16,16], index: 0, kind: input, shape index: {}]
  %s1 = inlined_call_operand.vmem [shape: f32[16,32], index: 1, kind: input, shape index: {}]
  %s2 = inlined_call_operand.vmem [shape: f32[1,32], index: 2, kind: input, shape index: {}]
  %s3 = inlined_call_operand.vmem [shape: f32[32,64], index: 3, kind: input, shape index: {}]
  %s4 = inlined_call_operand.vmem [shape: f32[1,64], index: 4, kind: input, shape index: {}]
  %s5 = inlined_call_operand.vmem [shape: f32[64,8], index: 5, kind: input, shape index: {}]
  %s6 = inlined_call_operand.vmem [shape: f32[1,8], index: 6, kind: input, shape index: {}]
  %s7 = inlined_call_operand.vmem [shape: f32[16,8], index: 7, kind: output, shape index: {}]
  %s8 = sld [smem:[#allocation0]]
  $region38: #{tpu_custom_call.1} parent=0
    _
  %s10 = ssub.s32 1, %s8
  %s11 = scalar_select 0, %s10, %s8
  // Predicated region
  $region2: #{tpu_custom_call.1} parent=0 // pred_check
    _
  $region3: #{tpu_custom_call.1} parent=0 // pred_check_branch
    %13 = sbr.rel (0) target = $region5
  $region4: #{tpu_custom_call.1} parent=0 // pred_region
    _
  $region5: #{tpu_custom_call.1} parent=0 // pred_fallthru
    _
  // Predicated region
  $region6: #{tpu_custom_call.1} parent=0 // pred_check
    _
  $region7: #{tpu_custom_call.1} parent=0 // pred_check_branch
    %15 = sbr.rel (0) target = $region9
  $region8: #{tpu_custom_call.1} parent=0 // pred_region
    _
  $region9: #{tpu_custom_call.1} parent=0 // pred_fallthru
    _
  // Predicated region
  $region10: #{tpu_custom_call.1} parent=0 // pred_check
    _
  $region11: #{tpu_custom_call.1} parent=0 // pred_check_branch
    %17 = sbr.rel (0) target = $region13
  $region12: #{tpu_custom_call.1} parent=0 // pred_region
    _
  $region13: #{tpu_custom_call.1} parent=0 // pred_fallthru
    _
  // Predicated region
  $region14: #{tpu_custom_call.1} parent=0 // pred_check
    _
  $region15: #{tpu_custom_call.1} parent=0 // pred_check_branch
    %19 = sbr.rel (0) target = $region17
  $region16: #{tpu_custom_call.1} parent=0 // pred_region
    _
  $region17: #{tpu_custom_call.1} parent=0 // pred_fallthru
    _
  // Predicated region
  $region18: #{tpu_custom_call.1} parent=0 // pred_check
    _
  $region19: #{tpu_custom_call.1} parent=0 // pred_check_branch
    %21 = sbr.rel (0) target = $region21
  $region20: #{tpu_custom_call.1} parent=0 // pred_region
    _
  $region21: #{tpu_custom_call.1} parent=0 // pred_fallthru
    _
  // Predicated region
  $region22: #{tpu_custom_call.1} parent=0 // pred_check
    _
  $region23: #{tpu_custom_call.1} parent=0 // pred_check_branch
    %23 = sbr.rel (0) target = $region25
  $region24: #{tpu_custom_call.1} parent=0 // pred_region
    _
  $region25: #{tpu_custom_call.1} parent=0 // pred_fallthru
    _
  // Predicated region
  $region26: #{tpu_custom_call.1} parent=0 // pred_check
    _
  $region27: #{tpu_custom_call.1} parent=0 // pred_check_branch
    %25 = sbr.rel (0) target = $region29
  $region28: #{tpu_custom_call.1} parent=0 // pred_region
    _
  $region29: #{tpu_custom_call.1} parent=0 // pred_fallthru
    _
  %v26 = vld [vmem:[%s0] sm:$0xff]
  %v27 = vld [vmem:[%s0 + $0x8] sm:$0xff]
  %v28 = vld [vmem:[%s1] sm:$0xff]
  %v29 = vld [vmem:[%s1 + $0x8] sm:$0xff]
  %v30 = vld [vmem:[%s2] sm:$0x1]
  %v32 = vlaneseq
  %v33 = vshrl.u32 %v32, 7
  %v34 = vsub.s32 0, %v33
  %v35 = vrot.slane %v30, %v34
  %vm37 = vcmask 130048
  %v39 = vsel %vm37, %v26, 0
  %v42 = vsel %vm37, %v27, 0
  %44 = vmatprep.subr.mxu0 0.0
  %45 = vmatpush1.msra.mxu0 %v28
  %46 = vmatprep.subr.mxu0 0.0
  %47 = vmatpush1.msra.mxu0 %v29
  %48 = vmatprep.subr.mxu0 0.0
  %49 = vmatpush1.msra.mxu0 0.0
  %50 = vmatprep.subr.mxu0 0.0
  %51 = vmatpush1.msra.mxu0 0.0
  %52 = vmatprep.subr.mxu0 0.0
  %53 = vmatpush1.msra.mxu0 0.0
  %54 = vmatprep.subr.mxu0 0.0
  %55 = vmatpush1.msra.mxu0 0.0
  %56 = vmatprep.subr.mxu0 0.0
  %57 = vmatpush1.msra.mxu0 0.0
  %58 = vmatprep.subr.mxu0 0.0
  %59 = vmatpush1.msra.mxu0 0.0
  %60 = vmatprep.subr.mxu0 0.0
  %61 = vmatpush1.msra.mxu0 0.0
  %62 = vmatprep.subr.mxu0 0.0
  %63 = vmatpush1.msra.mxu0 0.0
  %64 = vmatprep.subr.mxu0 0.0
  %65 = vmatpush1.msra.mxu0 0.0
  %66 = vmatprep.subr.mxu0 0.0
  %67 = vmatpush1.msra.mxu0 0.0
  %68 = vmatprep.subr.mxu0 0.0
  %69 = vmatpush1.msra.mxu0 0.0
  %70 = vmatprep.subr.mxu0 0.0
  %71 = vmatpush1.msra.mxu0 0.0
  %72 = vmatprep.subr.mxu0 0.0
  %73 = vmatpush1.msra.mxu0 0.0
  %74 = vmatprep.subr.mxu0 0.0
  %75 = vmatpush1.msra.mxu0 0.0
  %76 = vmatprep.subr.mxu0 0.0
  %77 = vmatpush1.msra.mxu0 0.0
  %78 = vmatprep.subr.mxu0 0.0
  %79 = vmatpush1.msra.mxu0 0.0
  %80 = vmatprep.subr.mxu0 0.0
  %81 = vmatpush1.msra.mxu0 0.0
  %82 = vmatprep.subr.mxu0 0.0
  %83 = vmatpush1.msra.mxu0 0.0
  %84 = vmatprep.subr.mxu0 0.0
  %85 = vmatpush1.msra.mxu0 0.0
  %86 = vmatprep.subr.mxu0 0.0
  %87 = vmatpush1.msra.mxu0 0.0
  %88 = vmatprep.subr.mxu0 0.0
  %89 = vmatpush1.msra.mxu0 0.0
  %90 = vmatprep.subr.mxu0 0.0
  %91 = vmatpush1.msra.mxu0 0.0
  %92 = vmatprep.subr.mxu0 0.0
  %93 = vmatpush1.msra.mxu0 0.0
  %94 = vmatprep.subr.mxu0 0.0
  %95 = vmatpush1.msra.mxu0 0.0
  %96 = vmatprep.subr.mxu0 0.0
  %97 = vmatpush1.msra.mxu0 0.0
  %98 = vmatprep.subr.mxu0 0.0
  %99 = vmatpush1.msra.mxu0 0.0
  %100 = vmatprep.subr.mxu0 0.0
  %101 = vmatpush1.msra.mxu0 0.0
  %102 = vmatprep.subr.mxu0 0.0
  %103 = vmatpush1.msra.mxu0 0.0
  %104 = vmatprep.subr.mxu0 0.0
  %105 = vmatpush1.msra.mxu0 0.0
  %106 = vmatprep.subr.mxu0 0.0
  %107 = vmatpush1.msra.mxu0 0.0
  %108 = vmatprep.mubr.f32.mxu0 0.0
  %109 = vmatmul.mubr.f32.gmra.mrb[0].mxu0 %v39
  %v110 = vpop.f32.mrb[0].mxu0
  %v111 = vadd.f32 %v35, %v110
  %v112 = vpop.f32.mrb[0].mxu0
  %113 = vmatprep.mubr.f32.mxu0 0.0
  %114 = vmatmul.mubr.f32.gmra.mrb[0].mxu0 %v42
  %v115 = vpop.f32.mrb[0].mxu0
  %v116 = vadd.f32 %v35, %v115
  %v117 = vpop.f32.mrb[0].mxu0
  %118 = vdwg.mxu0
  %v119 = vmax.f32 %v111, 0.0
  %v120 = vmax.f32 %v116, 0.0
  %v121 = vld [vmem:[%s3] sm:$0xff]
  %v122 = vld [vmem:[%s3 + $0x8] sm:$0xff]
  %v123 = vld [vmem:[%s3 + $0x10] sm:$0xff]
  %v124 = vld [vmem:[%s3 + $0x18] sm:$0xff]
  %v125 = vld [vmem:[%s4] sm:$0x1]
  %v127 = vlaneseq
  %v128 = vshrl.u32 %v127, 7
  %v129 = vsub.s32 0, %v128
  %v130 = vrot.slane %v125, %v129
  %vm132 = vcmask 261120
  %v134 = vsel %vm132, %v119, 0
  %v137 = vsel %vm132, %v120, 0
  %139 = vmatprep.subr.mxu0 0.0
  %140 = vmatpush1.msra.mxu0 %v121
  %141 = vmatprep.subr.mxu0 0.0
  %142 = vmatpush1.msra.mxu0 %v122
  %143 = vmatprep.subr.mxu0 0.0
  %144 = vmatpush1.msra.mxu0 %v123
  %145 = vmatprep.subr.mxu0 0.0
  %146 = vmatpush1.msra.mxu0 %v124
  %147 = vmatprep.subr.mxu0 0.0
  %148 = vmatpush1.msra.mxu0 0.0
  %149 = vmatprep.subr.mxu0 0.0
  %150 = vmatpush1.msra.mxu0 0.0
  %151 = vmatprep.subr.mxu0 0.0
  %152 = vmatpush1.msra.mxu0 0.0
  %153 = vmatprep.subr.mxu0 0.0
  %154 = vmatpush1.msra.mxu0 0.0
  %155 = vmatprep.subr.mxu0 0.0
  %156 = vmatpush1.msra.mxu0 0.0
  %157 = vmatprep.subr.mxu0 0.0
  %158 = vmatpush1.msra.mxu0 0.0
  %159 = vmatprep.subr.mxu0 0.0
  %160 = vmatpush1.msra.mxu0 0.0
  %161 = vmatprep.subr.mxu0 0.0
  %162 = vmatpush1.msra.mxu0 0.0
  %163 = vmatprep.subr.mxu0 0.0
  %164 = vmatpush1.msra.mxu0 0.0
  %165 = vmatprep.subr.mxu0 0.0
  %166 = vmatpush1.msra.mxu0 0.0
  %167 = vmatprep.subr.mxu0 0.0
  %168 = vmatpush1.msra.mxu0 0.0
  %169 = vmatprep.subr.mxu0 0.0
  %170 = vmatpush1.msra.mxu0 0.0
  %171 = vmatprep.subr.mxu0 0.0
  %172 = vmatpush1.msra.mxu0 0.0
  %173 = vmatprep.subr.mxu0 0.0
  %174 = vmatpush1.msra.mxu0 0.0
  %175 = vmatprep.subr.mxu0 0.0
  %176 = vmatpush1.msra.mxu0 0.0
  %177 = vmatprep.subr.mxu0 0.0
  %178 = vmatpush1.msra.mxu0 0.0
  %179 = vmatprep.subr.mxu0 0.0
  %180 = vmatpush1.msra.mxu0 0.0
  %181 = vmatprep.subr.mxu0 0.0
  %182 = vmatpush1.msra.mxu0 0.0
  %183 = vmatprep.subr.mxu0 0.0
  %184 = vmatpush1.msra.mxu0 0.0
  %185 = vmatprep.subr.mxu0 0.0
  %186 = vmatpush1.msra.mxu0 0.0
  %187 = vmatprep.subr.mxu0 0.0
  %188 = vmatpush1.msra.mxu0 0.0
  %189 = vmatprep.subr.mxu0 0.0
  %190 = vmatpush1.msra.mxu0 0.0
  %191 = vmatprep.subr.mxu0 0.0
  %192 = vmatpush1.msra.mxu0 0.0
  %193 = vmatprep.subr.mxu0 0.0
  %194 = vmatpush1.msra.mxu0 0.0
  %195 = vmatprep.subr.mxu0 0.0
  %196 = vmatpush1.msra.mxu0 0.0
  %197 = vmatprep.subr.mxu0 0.0
  %198 = vmatpush1.msra.mxu0 0.0
  %199 = vmatprep.subr.mxu0 0.0
  %200 = vmatpush1.msra.mxu0 0.0
  %201 = vmatprep.subr.mxu0 0.0
  %202 = vmatpush1.msra.mxu0 0.0
  %203 = vmatprep.mubr.f32.mxu0 0.0
  %204 = vmatmul.mubr.f32.gmra.mrb[0].mxu0 %v134
  %v205 = vpop.f32.mrb[0].mxu0
  %v206 = vadd.f32 %v130, %v205
  %v207 = vpop.f32.mrb[0].mxu0
  %208 = vmatprep.mubr.f32.mxu0 0.0
  %209 = vmatmul.mubr.f32.gmra.mrb[0].mxu0 %v137
  %v210 = vpop.f32.mrb[0].mxu0
  %v211 = vadd.f32 %v130, %v210
  %v212 = vpop.f32.mrb[0].mxu0
  %213 = vdwg.mxu0
  %v214 = vmax.f32 %v206, 0.0
  %v215 = vmax.f32 %v211, 0.0
  %v216 = vld [vmem:[%s5] sm:$0xff]
  %v217 = vld [vmem:[%s5 + $0x8] sm:$0xff]
  %v218 = vld [vmem:[%s5 + $0x10] sm:$0xff]
  %v219 = vld [vmem:[%s5 + $0x18] sm:$0xff]
  %v220 = vld [vmem:[%s5 + $0x20] sm:$0xff]
  %v221 = vld [vmem:[%s5 + $0x28] sm:$0xff]
  %v222 = vld [vmem:[%s5 + $0x30] sm:$0xff]
  %v223 = vld [vmem:[%s5 + $0x38] sm:$0xff]
  %v224 = vld [vmem:[%s6] sm:$0x1]
  %v226 = vlaneseq
  %v227 = vshrl.u32 %v226, 7
  %v228 = vsub.s32 0, %v227
  %v229 = vrot.slane %v224, %v228
  %vm231 = vcmask 523264
  %v233 = vsel %vm231, %v214, 0
  %v236 = vsel %vm231, %v215, 0
  %238 = vmatprep.subr.mxu0 0.0
  %239 = vmatpush1.msra.mxu0 %v216
  %240 = vmatprep.subr.mxu0 0.0
  %241 = vmatpush1.msra.mxu0 %v217
  %242 = vmatprep.subr.mxu0 0.0
  %243 = vmatpush1.msra.mxu0 %v218
  %244 = vmatprep.subr.mxu0 0.0
  %245 = vmatpush1.msra.mxu0 %v219
  %246 = vmatprep.subr.mxu0 0.0
  %247 = vmatpush1.msra.mxu0 %v220
  %248 = vmatprep.subr.mxu0 0.0
  %249 = vmatpush1.msra.mxu0 %v221
  %250 = vmatprep.subr.mxu0 0.0
  %251 = vmatpush1.msra.mxu0 %v222
  %252 = vmatprep.subr.mxu0 0.0
  %253 = vmatpush1.msra.mxu0 %v223
  %254 = vmatprep.subr.mxu0 0.0
  %255 = vmatpush1.msra.mxu0 0.0
  %256 = vmatprep.subr.mxu0 0.0
  %257 = vmatpush1.msra.mxu0 0.0
  %258 = vmatprep.subr.mxu0 0.0
  %259 = vmatpush1.msra.mxu0 0.0
  %260 = vmatprep.subr.mxu0 0.0
  %261 = vmatpush1.msra.mxu0 0.0
  %262 = vmatprep.subr.mxu0 0.0
  %263 = vmatpush1.msra.mxu0 0.0
  %264 = vmatprep.subr.mxu0 0.0
  %265 = vmatpush1.msra.mxu0 0.0
  %266 = vmatprep.subr.mxu0 0.0
  %267 = vmatpush1.msra.mxu0 0.0
  %268 = vmatprep.subr.mxu0 0.0
  %269 = vmatpush1.msra.mxu0 0.0
  %270 = vmatprep.subr.mxu0 0.0
  %271 = vmatpush1.msra.mxu0 0.0
  %272 = vmatprep.subr.mxu0 0.0
  %273 = vmatpush1.msra.mxu0 0.0
  %274 = vmatprep.subr.mxu0 0.0
  %275 = vmatpush1.msra.mxu0 0.0
  %276 = vmatprep.subr.mxu0 0.0
  %277 = vmatpush1.msra.mxu0 0.0
  %278 = vmatprep.subr.mxu0 0.0
  %279 = vmatpush1.msra.mxu0 0.0
  %280 = vmatprep.subr.mxu0 0.0
  %281 = vmatpush1.msra.mxu0 0.0
  %282 = vmatprep.subr.mxu0 0.0
  %283 = vmatpush1.msra.mxu0 0.0
  %284 = vmatprep.subr.mxu0 0.0
  %285 = vmatpush1.msra.mxu0 0.0
  %286 = vmatprep.subr.mxu0 0.0
  %287 = vmatpush1.msra.mxu0 0.0
  %288 = vmatprep.subr.mxu0 0.0
  %289 = vmatpush1.msra.mxu0 0.0
  %290 = vmatprep.subr.mxu0 0.0
  %291 = vmatpush1.msra.mxu0 0.0
  %292 = vmatprep.subr.mxu0 0.0
  %293 = vmatpush1.msra.mxu0 0.0
  %294 = vmatprep.subr.mxu0 0.0
  %295 = vmatpush1.msra.mxu0 0.0
  %296 = vmatprep.subr.mxu0 0.0
  %297 = vmatpush1.msra.mxu0 0.0
  %298 = vmatprep.subr.mxu0 0.0
  %299 = vmatpush1.msra.mxu0 0.0
  %300 = vmatprep.subr.mxu0 0.0
  %301 = vmatpush1.msra.mxu0 0.0
  %302 = vmatprep.mubr.f32.mxu0 0.0
  %303 = vmatmul.mubr.f32.gmra.mrb[0].mxu0 %v233
  %v304 = vpop.f32.mrb[0].mxu0
  %v305 = vadd.f32 %v229, %v304
  %v306 = vpop.f32.mrb[0].mxu0
  %307 = vmatprep.mubr.f32.mxu0 0.0
  %308 = vmatmul.mubr.f32.gmra.mrb[0].mxu0 %v236
  %v309 = vpop.f32.mrb[0].mxu0
  %v310 = vadd.f32 %v229, %v309
  %v311 = vpop.f32.mrb[0].mxu0
  %312 = vdwg.mxu0
  %vm313 = vcmask 64512
  %314 = vst.msk [vmem:[%s7] sm:$0xff] %vm313, %v305
  %315 = vst.msk [vmem:[%s7 + $0x8] sm:$0xff] %vm313, %v310
  // Predicated region
  $region30: #{tpu_custom_call.1} parent=0 // pred_check
    _
  $region31: #{tpu_custom_call.1} parent=0 // pred_check_branch
    %317 = sbr.rel (0) target = $region33
  $region32: #{tpu_custom_call.1} parent=0 // pred_region
    _
  $region33: #{tpu_custom_call.1} parent=0 // pred_fallthru
    _
  // Predicated region
  $region34: #{tpu_custom_call.1} parent=0 // pred_check
    _
  $region35: #{tpu_custom_call.1} parent=0 // pred_check_branch
    %319 = sbr.rel (0) target = $region37
  $region36: #{tpu_custom_call.1} parent=0 // pred_region
    _
  $region37: #{tpu_custom_call.1} parent=0 // pred_fallthru
    _

</llo_original>
